<compile_context>
chip_gen: v6e
topology: v6e:2x2x1
jax: 0.10.0
libtpu: 0.0.40
codegen_flags: <defaults>
</compile_context>

<pallas_src>
import jax
import jax.numpy as jnp
from jax.experimental import pallas as pl
from jax.experimental.pallas import tpu as pltpu


def _critic_kernel(s_ref, a_ref, w1s_ref, w1a_ref, b1_ref,
                   w2_ref, b2_ref, w3_ref, b3_ref, q_ref):
    # Layer 1: Linear(D -> 256) + ReLU, split over (s, a) so no concat needed.
    h1 = (jnp.dot(s_ref[...], w1s_ref[...], preferred_element_type=jnp.float32)
          + jnp.dot(a_ref[...], w1a_ref[...], preferred_element_type=jnp.float32)
          + b1_ref[...])
    h1 = jnp.maximum(h1, 0.0)

    # Layer 2: Linear(256 -> 256) + ReLU (bf16 MXU operands, f32 accumulate).
    h2 = (jnp.dot(h1.astype(jnp.bfloat16), w2_ref[...],
                  preferred_element_type=jnp.float32)
          + b2_ref[...])
    h2 = jnp.maximum(h2, 0.0)

    # Output layer: Linear(256 -> 1) as VPU multiply + lane reduce (MXU-free).
    q = jnp.sum(h2 * w3_ref[...], axis=-1, keepdims=True) + b3_ref[0]

    # PyTorch forward() uses the same (q1) weights for q2; write q once, the
    # wrapper duplicates it.
    q_ref[...] = q


def critic_forward(s, a, params, *, tm=512):
    """Pallas implementation of CriticNet.forward(s, a) -> (q1, q2)."""
    B, n_state = s.shape
    _, n_action = a.shape
    H = params["w1s"].shape[1]  # 256

    # Batch tiling: one block if small, otherwise TM-row tiles (pad last tile).
    if B <= tm:
        TM, Bp = B, B
    else:
        TM = tm
        Bp = pl.cdiv(B, TM) * TM
    if Bp != B:
        pad = Bp - B
        s = jnp.pad(s, ((0, pad), (0, 0)))
        a = jnp.pad(a, ((0, pad), (0, 0)))
    grid = (Bp // TM,)

    # bf16 MXU operands (f32 accumulation inside the kernel).
    s_bf = s.astype(jnp.bfloat16)
    a_bf = a.astype(jnp.bfloat16)
    w1s = params["w1s"].astype(jnp.bfloat16)
    w1a = params["w1a"].astype(jnp.bfloat16)
    w2 = params["w2"].astype(jnp.bfloat16)

    D = n_state + n_action
    flops = 2 * Bp * (D * H + H * H + H)
    bytes_accessed = (
        s_bf.size * 2 + a_bf.size * 2                 # bf16 activations in
        + w1s.size * 2 + w1a.size * 2 + w2.size * 2   # bf16 weights
        + (params["b1"].size + params["b2"].size
           + params["w3"].size + params["b3"].size) * 4
        + Bp * 1 * 4                                  # f32 q out
    )

    q = pl.pallas_call(
        _critic_kernel,
        out_shape=jax.ShapeDtypeStruct((Bp, 1), jnp.float32),
        grid=grid,
        in_specs=[
            pl.BlockSpec((TM, n_state), lambda i: (i, 0)),     # s tile
            pl.BlockSpec((TM, n_action), lambda i: (i, 0)),    # a tile
            pl.BlockSpec((n_state, H), lambda i: (0, 0)),      # w1s (resident)
            pl.BlockSpec((n_action, H), lambda i: (0, 0)),     # w1a (resident)
            pl.BlockSpec((1, H), lambda i: (0, 0)),            # b1
            pl.BlockSpec((H, H), lambda i: (0, 0)),            # w2 (resident)
            pl.BlockSpec((1, H), lambda i: (0, 0)),            # b2
            pl.BlockSpec((1, H), lambda i: (0, 0)),            # w3 row
            pl.BlockSpec(memory_space=pltpu.MemorySpace.SMEM), # b3 scalar
        ],
        out_specs=pl.BlockSpec((TM, 1), lambda i: (i, 0)),
        compiler_params=pltpu.CompilerParams(
            dimension_semantics=("parallel",)),
        cost_estimate=pl.CostEstimate(
            flops=flops, transcendentals=0, bytes_accessed=bytes_accessed),
    )(s_bf, a_bf, w1s, w1a, params["b1"], w2, params["b2"],
      params["w3"], params["b3"])

    q = q[:B]
    # The original forward() computes q2 with the q1 weights, so q2 == q1.
    return q, q


def init_params(key, n_state, n_action, hidden=256):
    """Synthetic init mirroring CriticNet.__init__ shapes.

    Weights ~ N(0, 0.1); biases use PyTorch's default Linear bias init
    uniform(-1/sqrt(fan_in), 1/sqrt(fan_in)).  The first-layer weight is
    stored split (w1s for states, w1a for actions), all weights transposed to
    (in_features, out_features); w3 is a (1, hidden) row, b3 a (1,) scalar.
    """
    d_in = n_state + n_action
    keys = jax.random.split(key, 6)

    def bias(k, fan_in, shape):
        bound = 1.0 / jnp.sqrt(jnp.float32(fan_in))
        return jax.random.uniform(k, shape, jnp.float32, -bound, bound)

    w1 = 0.1 * jax.random.normal(keys[0], (d_in, hidden), jnp.float32)
    params = {
        "w1s": w1[:n_state],
        "w1a": w1[n_state:],
        "b1": bias(keys[1], d_in, (1, hidden)),
        "w2": 0.1 * jax.random.normal(keys[2], (hidden, hidden), jnp.float32),
        "b2": bias(keys[3], hidden, (1, hidden)),
        "w3": 0.1 * jax.random.normal(keys[4], (1, hidden), jnp.float32),
        "b3": bias(keys[5], hidden, (1,)),
    }
    # TODO(synk): the module also creates q2_in_to_y1 / q2_y1_to_y2 / q2_out,
    # but forward() never uses them, so they are intentionally not materialized.
    return params


def _ref_forward(s, a, params):
    """Pure-JAX reference with the same bf16-operand / f32-accumulate math."""
    h1 = (jnp.dot(s.astype(jnp.bfloat16), params["w1s"].astype(jnp.bfloat16),
                  preferred_element_type=jnp.float32)
          + jnp.dot(a.astype(jnp.bfloat16), params["w1a"].astype(jnp.bfloat16),
                    preferred_element_type=jnp.float32)
          + params["b1"])
    h1 = jnp.maximum(h1, 0.0)
    h2 = (jnp.dot(h1.astype(jnp.bfloat16), params["w2"].astype(jnp.bfloat16),
                  preferred_element_type=jnp.float32)
          + params["b2"])
    h2 = jnp.maximum(h2, 0.0)
    return jnp.sum(h2 * params["w3"], axis=-1, keepdims=True) + params["b3"]


if __name__ == "__main__":
    key = jax.random.PRNGKey(0)
    k_s, k_a, k_p = jax.random.split(key, 3)

    B, n_state, n_action = 8, 16, 4
    s = jax.random.normal(k_s, (B, n_state), jnp.float32)
    a = jax.random.normal(k_a, (B, n_action), jnp.float32)

    params = init_params(k_p, n_state, n_action)

    q1, q2 = critic_forward(s, a, params)
    jax.block_until_ready((q1, q2))

    q_ref = _ref_forward(s, a, params)
    assert q1.shape == (B, 1) and q2.shape == (B, 1)
    assert jnp.allclose(q1, q_ref, atol=2e-3, rtol=2e-3), "q1 mismatch vs reference"
    assert jnp.allclose(q2, q_ref, atol=2e-3, rtol=2e-3), "q2 mismatch vs reference"

    print("KERNEL_OK")
</pallas_src>

<mosaic_0001>
module attributes {stable_mosaic.version = 11 : i64} {
  func.func @_critic_kernel(%arg0: i32, %arg1: memref<8x16xbf16, #tpu.memory_space<vmem>>, %arg2: memref<8x4xbf16, #tpu.memory_space<vmem>>, %arg3: memref<16x256xbf16, #tpu.memory_space<vmem>>, %arg4: memref<4x256xbf16, #tpu.memory_space<vmem>>, %arg5: memref<1x256xf32, #tpu.memory_space<vmem>>, %arg6: memref<256x256xbf16, #tpu.memory_space<vmem>>, %arg7: memref<1x256xf32, #tpu.memory_space<vmem>>, %arg8: memref<1x256xf32, #tpu.memory_space<vmem>>, %arg9: memref<1xf32, #tpu.memory_space<smem>>, %arg10: memref<8x1xf32, #tpu.memory_space<vmem>>) attributes {dimension_semantics = [#tpu.dimension_semantics<parallel>], iteration_bounds = array<i64: 1>, scalar_prefetch = 0 : i64, scratch_operands = 0 : i64, tpu.core_type = #tpu.core_type<tc>, window_params = [{transform_indices = @transform_0, window_bounds = array<i64: 8, 16>}, {transform_indices = @transform_1, window_bounds = array<i64: 8, 4>}, {pipeline_mode = #tpu.pipeline_mode<synchronous>, transform_indices = @transform_2, window_bounds = array<i64: 16, 256>}, {pipeline_mode = #tpu.pipeline_mode<synchronous>, transform_indices = @transform_3, window_bounds = array<i64: 4, 256>}, {pipeline_mode = #tpu.pipeline_mode<synchronous>, transform_indices = @transform_4, window_bounds = array<i64: 1, 256>}, {pipeline_mode = #tpu.pipeline_mode<synchronous>, transform_indices = @transform_5, window_bounds = array<i64: 256, 256>}, {pipeline_mode = #tpu.pipeline_mode<synchronous>, transform_indices = @transform_6, window_bounds = array<i64: 1, 256>}, {pipeline_mode = #tpu.pipeline_mode<synchronous>, transform_indices = @transform_7, window_bounds = array<i64: 1, 256>}, {transform_indices = @transform_8, window_bounds = array<i64: 1>}, {transform_indices = @transform_9, window_bounds = array<i64: 8, 1>}]} {
    %c0 = arith.constant 0 : index
    %c0_0 = arith.constant 0 : index
    %0 = vector.load %arg1[%c0, %c0_0] : memref<8x16xbf16, #tpu.memory_space<vmem>>, vector<8x16xbf16>
    %c0_1 = arith.constant 0 : index
    %c0_2 = arith.constant 0 : index
    %1 = vector.load %arg3[%c0_1, %c0_2] : memref<16x256xbf16, #tpu.memory_space<vmem>>, vector<16x256xbf16>
    %cst = arith.constant dense<0.000000e+00> : vector<8x256xf32>
    %2 = tpu.matmul %0, %1, %cst {dimension_numbers = #tpu.dot_dimension_numbers<[1], [0], [0], [1], [0, 0, 1, 1], [], []>} : vector<8x16xbf16>, vector<16x256xbf16>, vector<8x256xf32> -> vector<8x256xf32>
    %c0_3 = arith.constant 0 : index
    %c0_4 = arith.constant 0 : index
    %3 = vector.load %arg2[%c0_3, %c0_4] : memref<8x4xbf16, #tpu.memory_space<vmem>>, vector<8x4xbf16>
    %c0_5 = arith.constant 0 : index
    %c0_6 = arith.constant 0 : index
    %4 = vector.load %arg4[%c0_5, %c0_6] : memref<4x256xbf16, #tpu.memory_space<vmem>>, vector<4x256xbf16>
    %cst_7 = arith.constant dense<0.000000e+00> : vector<8x256xf32>
    %5 = tpu.matmul %3, %4, %cst_7 {dimension_numbers = #tpu.dot_dimension_numbers<[1], [0], [0], [1], [0, 0, 1, 1], [], []>} : vector<8x4xbf16>, vector<4x256xbf16>, vector<8x256xf32> -> vector<8x256xf32>
    %6 = arith.addf %2, %5 : vector<8x256xf32>
    %c0_8 = arith.constant 0 : index
    %c0_9 = arith.constant 0 : index
    %7 = vector.load %arg5[%c0_8, %c0_9] : memref<1x256xf32, #tpu.memory_space<vmem>>, vector<1x256xf32>
    %8 = vector.broadcast %7 : vector<1x256xf32> to vector<8x256xf32>
    %9 = arith.addf %6, %8 : vector<8x256xf32>
    %cst_10 = arith.constant 0.000000e+00 : f32
    %10 = vector.broadcast %cst_10 : f32 to vector<8x256xf32>
    %11 = arith.maximumf %9, %10 : vector<8x256xf32>
    %12 = arith.truncf %11 : vector<8x256xf32> to vector<8x256xbf16>
    %c0_11 = arith.constant 0 : index
    %c0_12 = arith.constant 0 : index
    %13 = vector.load %arg6[%c0_11, %c0_12] : memref<256x256xbf16, #tpu.memory_space<vmem>>, vector<256x256xbf16>
    %cst_13 = arith.constant dense<0.000000e+00> : vector<8x256xf32>
    %14 = tpu.matmul %12, %13, %cst_13 {dimension_numbers = #tpu.dot_dimension_numbers<[1], [0], [0], [1], [0, 0, 1, 1], [], []>} : vector<8x256xbf16>, vector<256x256xbf16>, vector<8x256xf32> -> vector<8x256xf32>
    %c0_14 = arith.constant 0 : index
    %c0_15 = arith.constant 0 : index
    %15 = vector.load %arg7[%c0_14, %c0_15] : memref<1x256xf32, #tpu.memory_space<vmem>>, vector<1x256xf32>
    %16 = vector.broadcast %15 : vector<1x256xf32> to vector<8x256xf32>
    %17 = arith.addf %14, %16 : vector<8x256xf32>
    %cst_16 = arith.constant 0.000000e+00 : f32
    %18 = vector.broadcast %cst_16 : f32 to vector<8x256xf32>
    %19 = arith.maximumf %17, %18 : vector<8x256xf32>
    %c0_17 = arith.constant 0 : index
    %c0_18 = arith.constant 0 : index
    %20 = vector.load %arg8[%c0_17, %c0_18] : memref<1x256xf32, #tpu.memory_space<vmem>>, vector<1x256xf32>
    %21 = vector.broadcast %20 : vector<1x256xf32> to vector<8x256xf32>
    %22 = arith.mulf %19, %21 : vector<8x256xf32>
    %cst_19 = arith.constant dense<0.000000e+00> : vector<8xf32>
    %23 = vector.multi_reduction <add>, %22, %cst_19 [1] : vector<8x256xf32> to vector<8xf32>
    %24 = vector.shape_cast %23 : vector<8xf32> to vector<8x1xf32>
    %c0_20 = arith.constant 0 : index
    %25 = memref.load %arg9[%c0_20] : memref<1xf32, #tpu.memory_space<smem>>
    %26 = vector.broadcast %25 : f32 to vector<8x1xf32>
    %27 = arith.addf %24, %26 : vector<8x1xf32>
    %c0_21 = arith.constant 0 : index
    %c0_22 = arith.constant 0 : index
    %28 = vector.load %arg10[%c0_21, %c0_22] : memref<8x1xf32, #tpu.memory_space<vmem>>, vector<8x1xf32>
    tpu.vector_store %arg10[%c0_21, %c0_22], %27 {strides = array<i32>} : memref<8x1xf32, #tpu.memory_space<vmem>>, vector<8x1xf32>,
    return
  }
  func.func @transform_0(%arg0: i32) -> (i32, i32) {
    %c0_i32 = arith.constant 0 : i32
    %c0_i32_0 = arith.constant 0 : i32
    return %arg0, %c0_i32 : i32, i32
  }
  func.func @transform_1(%arg0: i32) -> (i32, i32) {
    %c0_i32 = arith.constant 0 : i32
    %c0_i32_0 = arith.constant 0 : i32
    return %arg0, %c0_i32 : i32, i32
  }
  func.func @transform_2(%arg0: i32) -> (i32, i32) {
    %c0_i32 = arith.constant 0 : i32
    %c0_i32_0 = arith.constant 0 : i32
    %c0_i32_1 = arith.constant 0 : i32
    return %c0_i32, %c0_i32_0 : i32, i32
  }
  func.func @transform_3(%arg0: i32) -> (i32, i32) {
    %c0_i32 = arith.constant 0 : i32
    %c0_i32_0 = arith.constant 0 : i32
    %c0_i32_1 = arith.constant 0 : i32
    return %c0_i32, %c0_i32_0 : i32, i32
  }
  func.func @transform_4(%arg0: i32) -> (i32, i32) {
    %c0_i32 = arith.constant 0 : i32
    %c0_i32_0 = arith.constant 0 : i32
    %c0_i32_1 = arith.constant 0 : i32
    return %c0_i32, %c0_i32_0 : i32, i32
  }
  func.func @transform_5(%arg0: i32) -> (i32, i32) {
    %c0_i32 = arith.constant 0 : i32
    %c0_i32_0 = arith.constant 0 : i32
    %c0_i32_1 = arith.constant 0 : i32
    return %c0_i32, %c0_i32_0 : i32, i32
  }
  func.func @transform_6(%arg0: i32) -> (i32, i32) {
    %c0_i32 = arith.constant 0 : i32
    %c0_i32_0 = arith.constant 0 : i32
    %c0_i32_1 = arith.constant 0 : i32
    return %c0_i32, %c0_i32_0 : i32, i32
  }
  func.func @transform_7(%arg0: i32) -> (i32, i32) {
    %c0_i32 = arith.constant 0 : i32
    %c0_i32_0 = arith.constant 0 : i32
    %c0_i32_1 = arith.constant 0 : i32
    return %c0_i32, %c0_i32_0 : i32, i32
  }
  func.func @transform_8(%arg0: i32) -> i32 {
    %c0_i32 = arith.constant 0 : i32
    %c0_i32_0 = arith.constant 0 : i32
    return %c0_i32 : i32
  }
  func.func @transform_9(%arg0: i32) -> (i32, i32) {
    %c0_i32 = arith.constant 0 : i32
    %c0_i32_0 = arith.constant 0 : i32
    return %arg0, %c0_i32 : i32, i32
  }
}

</mosaic_0001>

<llo_original>
// kernel: tpu_custom_call.1
$region0: #{tpu_custom_call.1}
  #allocation0 [shape = 'u32[]', space=smem, size = 0x4, offset = 0x4, fixed_abs, tag = 'smem constant byte address 0x4 - core index']
  #allocation1 [shape = 'u32[144,128]{1,0:T(1,128)}', space=vmem, size = 0x12000, scoped, tag = 'internal scratch']
  #allocation2 [shape = 'f32[1]{0:T(128)S(6)}', space=smem, size = 0x200, scoped, tag = 'scoped memory for tpu_custom_call.1']
  %s0 = inlined_call_operand.vmem [shape: bf16[8,16], index: 0, kind: input, shape index: {}]
  %s1 = inlined_call_operand.vmem [shape: bf16[8,4], index: 1, kind: input, shape index: {}]
  %s2 = inlined_call_operand.hbm [shape: bf16[16,256], index: 2, kind: input, shape index: {}]
  %s3 = inlined_call_operand.vmem [shape: bf16[4,256], index: 3, kind: input, shape index: {}]
  %s4 = inlined_call_operand.vmem [shape: f32[1,256], index: 4, kind: input, shape index: {}]
  %s5 = inlined_call_operand.hbm [shape: bf16[256,256], index: 5, kind: input, shape index: {}]
  %s6 = inlined_call_operand.vmem [shape: f32[1,256], index: 6, kind: input, shape index: {}]
  %s7 = inlined_call_operand.vmem [shape: f32[1,256], index: 7, kind: input, shape index: {}]
  %s8 = inlined_call_operand.<no memory space> [shape: f32[1], index: 8, kind: input, shape index: {}]
  %s9 = inlined_call_operand.vmem [shape: f32[8,1], index: 9, kind: output, shape index: {}]
  %s10 = sld [smem:[#allocation0]]
  $region54: #{tpu_custom_call.1} parent=0
    _
  %s12 = ssub.s32 1, %s10
  %s13 = scalar_select 0, %s12, %s10
  %14 = sst [smem:[#allocation2]] %s8
  $region1: #{tpu_custom_call.1} parent=0
    #allocation3 [shape = 'u8[8192]{0}', space=vmem, size = 0x2000, scoped, tag = 'input window, operand 2, single buffered']
    #allocation4 [shape = 's32[1]{0}', space=sflag, size = 0x4, scoped, tag = 'scoped memory for tpu_custom_call.1']
    #allocation5 [shape = 'u8[131072]{0}', space=vmem, size = 0x20000, scoped, tag = 'input window, operand 5, single buffered']
    #allocation6 [shape = 's32[1]{0}', space=sflag, size = 0x4, scoped, tag = 'scoped memory for tpu_custom_call.1']
    %15 = vsyncpa [#allocation4], 0
    %16 = vsyncpa [#allocation6], 0
    // Predicated region
    $region2: #{tpu_custom_call.1} parent=1 // pred_check
      _
    $region3: #{tpu_custom_call.1} parent=1 // pred_check_branch
      %18 = sbr.rel (0) target = $region5
    $region4: #{tpu_custom_call.1} parent=1 // pred_region
      _
    $region5: #{tpu_custom_call.1} parent=1 // pred_fallthru
      _
    // Predicated region
    $region6: #{tpu_custom_call.1} parent=1 // pred_check
      _
    $region7: #{tpu_custom_call.1} parent=1 // pred_check_branch
      %20 = sbr.rel (0) target = $region9
    $region8: #{tpu_custom_call.1} parent=1 // pred_region
      _
    $region9: #{tpu_custom_call.1} parent=1 // pred_fallthru
      _
    // Predicated region
    $region10: #{tpu_custom_call.1} parent=1 // pred_check
      _
    $region11: #{tpu_custom_call.1} parent=1 // pred_check_branch
      %22 = sbr.rel (0) target = $region13
    $region12: #{tpu_custom_call.1} parent=1 // pred_region
      %s24 = ssub.s32 256, 256
      %25 = vsyncadd [#allocation4], %s24
      %s26 = sshll.u32 [#allocation3], 4
      %s27 = int_to_ptr.vmem [resolvable:$true] %s26
      %32 = dma.hbm_to_vmem [thread:$0]  %s2, 256, %s27, [#allocation4], 128, 128, 8
    $region13: #{tpu_custom_call.1} parent=1 // pred_fallthru
      _
    // Predicated region
    $region14: #{tpu_custom_call.1} parent=1 // pred_check
      _
    $region15: #{tpu_custom_call.1} parent=1 // pred_check_branch
      %34 = sbr.rel (0) target = $region17
    $region16: #{tpu_custom_call.1} parent=1 // pred_region
      _
    $region17: #{tpu_custom_call.1} parent=1 // pred_fallthru
      _
    // Predicated region
    $region18: #{tpu_custom_call.1} parent=1 // pred_check
      _
    $region19: #{tpu_custom_call.1} parent=1 // pred_check_branch
      %36 = sbr.rel (0) target = $region21
    $region20: #{tpu_custom_call.1} parent=1 // pred_region
      _
    $region21: #{tpu_custom_call.1} parent=1 // pred_fallthru
      _
    // Predicated region
    $region22: #{tpu_custom_call.1} parent=1 // pred_check
      _
    $region23: #{tpu_custom_call.1} parent=1 // pred_check_branch
      %38 = sbr.rel (0) target = $region25
    $region24: #{tpu_custom_call.1} parent=1 // pred_region
      %s40 = ssub.s32 4096, 4096
      %41 = vsyncadd [#allocation6], %s40
      %s42 = sshll.u32 [#allocation5], 4
      %s43 = int_to_ptr.vmem [resolvable:$true] %s42
      %48 = dma.hbm_to_vmem [thread:$0]  %s5, 4096, %s43, [#allocation6], 128, 128, 8
    $region25: #{tpu_custom_call.1} parent=1 // pred_fallthru
      _
    // Predicated region
    $region26: #{tpu_custom_call.1} parent=1 // pred_check
      _
    $region27: #{tpu_custom_call.1} parent=1 // pred_check_branch
      %50 = sbr.rel (0) target = $region29
    $region28: #{tpu_custom_call.1} parent=1 // pred_region
      _
    $region29: #{tpu_custom_call.1} parent=1 // pred_fallthru
      _
    // Predicated region
    $region30: #{tpu_custom_call.1} parent=1 // pred_check
      _
    $region31: #{tpu_custom_call.1} parent=1 // pred_check_branch
      %52 = sbr.rel (0) target = $region33
    $region32: #{tpu_custom_call.1} parent=1 // pred_region
      _
    $region33: #{tpu_custom_call.1} parent=1 // pred_fallthru
      _
    // Predicated region
    $region34: #{tpu_custom_call.1} parent=1 // pred_check
      _
    $region35: #{tpu_custom_call.1} parent=1 // pred_check_branch
      %54 = sbr.rel (0) target = $region37
    $region36: #{tpu_custom_call.1} parent=1 // pred_region
      _
    $region37: #{tpu_custom_call.1} parent=1 // pred_fallthru
      _
    // Predicated region
    $region38: #{tpu_custom_call.1} parent=1 // pred_check
      _
    $region39: #{tpu_custom_call.1} parent=1 // pred_check_branch
      %56 = sbr.rel (0) target = $region41
    $region40: #{tpu_custom_call.1} parent=1 // pred_region
      %57 = dma.done [#allocation4], 256
    $region41: #{tpu_custom_call.1} parent=1 // pred_fallthru
      _
    // Predicated region
    $region42: #{tpu_custom_call.1} parent=1 // pred_check
      _
    $region43: #{tpu_custom_call.1} parent=1 // pred_check_branch
      %59 = sbr.rel (0) target = $region45
    $region44: #{tpu_custom_call.1} parent=1 // pred_region
      %60 = dma.done [#allocation6], 4096
    $region45: #{tpu_custom_call.1} parent=1 // pred_fallthru
      _
    %v62 = vld [vmem:[%s0] sm:$0xf]
    %v63 = vld [vmem:[#allocation3] sm:$0xff]
    %v64 = vld [vmem:[#allocation3 + $0x8] sm:$0xff]
    %v65 = vld [vmem:[%s1] sm:$0xf]
    %v66 = vld [vmem:[%s3] sm:$0xf]
    %v69 = vunpack.c.l.s4 1983009808
    %v70 = vunpack.c.0.s8 %v69
    %v71 = vlaneseq
    %v72 = vshrl.u32 %v71, 7
    %v73 = vsub.s32 %v70, %v72
    %v74 = vrot.slane %v66, %v73
    %v75 = vcombine.high %v74, %v74
    %vm76 = vcmask 31744
    %v78 = vsel %vm76, %v65, 0
    %vm80 = vcmask 1041408
    %v82 = vsel %vm80, %v74, 0
    %v85 = vsel %vm80, %v75, 0
    %87 = vmatprep.subr.bf16.mxu0 0
    %88 = vmatpush1.bf16.msra.mxu0 0
    %89 = vmatprep.subr.bf16.mxu0 0
    %90 = vmatpush1.bf16.msra.mxu0 0
    %91 = vmatprep.subr.bf16.mxu0 0
    %92 = vmatpush1.bf16.msra.mxu0 0
    %93 = vmatprep.subr.bf16.mxu0 0
    %94 = vmatpush1.bf16.msra.mxu0 0
    %95 = vmatprep.subr.bf16.mxu0 0
    %96 = vmatpush1.bf16.msra.mxu0 0
    %97 = vmatprep.subr.bf16.mxu0 0
    %98 = vmatpush1.bf16.msra.mxu0 0
    %99 = vmatprep.subr.bf16.mxu0 0
    %100 = vmatpush1.bf16.msra.mxu0 0
    %101 = vmatprep.subr.bf16.mxu0 %v85
    %102 = vmatpush1.bf16.msra.mxu0 %v82
    %103 = vmatprep.subr.bf16.mxu0 0
    %104 = vmatpush2.bf16.msra.mxu0 0
    %105 = vmatprep.subr.bf16.mxu0 0
    %106 = vmatpush2.bf16.msra.mxu0 0
    %107 = vmatprep.subr.bf16.mxu0 0
    %108 = vmatpush2.bf16.msra.mxu0 0
    %109 = vmatprep.subr.bf16.mxu0 0
    %110 = vmatpush2.bf16.msra.mxu0 0
    %111 = vmatprep.subr.bf16.mxu0 0
    %112 = vmatpush2.bf16.msra.mxu0 0
    %113 = vmatprep.subr.bf16.mxu0 0
    %114 = vmatpush2.bf16.msra.mxu0 0
    %115 = vmatprep.subr.bf16.mxu0 0
    %116 = vmatpush2.bf16.msra.mxu0 0
    %117 = vmatprep.subr.bf16.mxu0 0
    %118 = vmatpush2.bf16.msra.mxu0 0
    %119 = vmatprep.mubr.bf16.mxu0 0
    %120 = vmatmul.mubr.bf16.gmra.mxu0 %v78
    %v121 = vpop.f32.mrf.mxu0
    %v122 = vadd.f32 0.0, %v121
    %v123 = vpop.f32.mrf.mxu0
    %v124 = vadd.f32 0.0, %v123
    %v125 = vpop.f32.mrf.mxu0
    %v126 = vpop.f32.mrf.mxu0
    %127 = vdwg.mxu0
    %v130 = vunpack.c.l.b16 %v63
    %v131 = vunpack.c.h.b16 %v63
    %v132 = vunpack.c.l.b16 %v64
    %v133 = vunpack.c.h.b16 %v64
    %v134 = vpack.c.b16 %v132, %v130
    %v135 = vpack.c.b16 %v133, %v131
    %vm138 = vcmask 130048
    %v140 = vsel %vm138, %v62, 0
    %142 = vmatprep.subr.bf16.mxu0 0
    %143 = vmatpush1.bf16.msra.mxu0 0
    %144 = vmatprep.subr.bf16.mxu0 0
    %145 = vmatpush1.bf16.msra.mxu0 0
    %146 = vmatprep.subr.bf16.mxu0 0
    %147 = vmatpush1.bf16.msra.mxu0 0
    %148 = vmatprep.subr.bf16.mxu0 0
    %149 = vmatpush1.bf16.msra.mxu0 0
    %150 = vmatprep.subr.bf16.mxu0 0
    %151 = vmatpush1.bf16.msra.mxu0 0
    %152 = vmatprep.subr.bf16.mxu0 0
    %153 = vmatpush1.bf16.msra.mxu0 0
    %154 = vmatprep.subr.bf16.mxu0 0
    %155 = vmatpush1.bf16.msra.mxu0 0
    %156 = vmatprep.subr.bf16.mxu0 %v135
    %157 = vmatpush1.bf16.msra.mxu0 %v134
    %158 = vmatprep.subr.bf16.mxu0 0
    %159 = vmatpush2.bf16.msra.mxu0 0
    %160 = vmatprep.subr.bf16.mxu0 0
    %161 = vmatpush2.bf16.msra.mxu0 0
    %162 = vmatprep.subr.bf16.mxu0 0
    %163 = vmatpush2.bf16.msra.mxu0 0
    %164 = vmatprep.subr.bf16.mxu0 0
    %165 = vmatpush2.bf16.msra.mxu0 0
    %166 = vmatprep.subr.bf16.mxu0 0
    %167 = vmatpush2.bf16.msra.mxu0 0
    %168 = vmatprep.subr.bf16.mxu0 0
    %169 = vmatpush2.bf16.msra.mxu0 0
    %170 = vmatprep.subr.bf16.mxu0 0
    %171 = vmatpush2.bf16.msra.mxu0 0
    %172 = vmatprep.subr.bf16.mxu0 0
    %173 = vmatpush2.bf16.msra.mxu0 0
    %174 = vmatprep.mubr.bf16.mxu0 0
    %175 = vmatmul.mubr.bf16.gmra.mxu0 %v140
    %v176 = vpop.f32.mrf.mxu0
    %v177 = vadd.f32 %v122, %v176
    %v178 = vpop.f32.mrf.mxu0
    %v179 = vadd.f32 %v124, %v178
    %v180 = vpop.f32.mrf.mxu0
    %v181 = vpop.f32.mrf.mxu0
    %182 = vdwg.mxu0
    %v183 = vld [vmem:[%s4] sm:$0x3]
    %v185 = vlaneseq
    %v186 = vshrl.u32 %v185, 7
    %v187 = vsub.s32 0, %v186
    %v188 = vrot.slane %v183, %v187
    %v189 = vlaneseq
    %v190 = vshrl.u32 %v189, 7
    %v191 = vsub.s32 1, %v190
    %v192 = vrot.slane %v183, %v191
    %v195 = vadd.f32 %v177, %v188
    %v196 = vadd.f32 %v179, %v192
    %v197 = vmax.f32 %v195, 0.0
    %v198 = vmax.f32 %v196, 0.0
    %v199 = vpack.c.bf16 %v197, %v197
    %v200 = vpack.c.bf16 %v198, %v198
    %v201 = vld [vmem:[#allocation5] sm:$0xff]
    %v202 = vld [vmem:[#allocation5 + $0x8] sm:$0xff]
    %v203 = vld [vmem:[#allocation5 + $0x10] sm:$0xff]
    %v204 = vld [vmem:[#allocation5 + $0x18] sm:$0xff]
    %v205 = vld [vmem:[#allocation5 + $0x20] sm:$0xff]
    %v206 = vld [vmem:[#allocation5 + $0x28] sm:$0xff]
    %v207 = vld [vmem:[#allocation5 + $0x30] sm:$0xff]
    %v208 = vld [vmem:[#allocation5 + $0x38] sm:$0xff]
    %v209 = vld [vmem:[#allocation5 + $0x40] sm:$0xff]
    %v210 = vld [vmem:[#allocation5 + $0x48] sm:$0xff]
    %v211 = vld [vmem:[#allocation5 + $0x50] sm:$0xff]
    %v212 = vld [vmem:[#allocation5 + $0x58] sm:$0xff]
    %v213 = vld [vmem:[#allocation5 + $0x60] sm:$0xff]
    %v214 = vld [vmem:[#allocation5 + $0x68] sm:$0xff]
    %v215 = vld [vmem:[#allocation5 + $0x70] sm:$0xff]
    %v216 = vld [vmem:[#allocation5 + $0x78] sm:$0xff]
    %v217 = vld [vmem:[#allocation5 + $0x80] sm:$0xff]
    %v218 = vld [vmem:[#allocation5 + $0x88] sm:$0xff]
    %v219 = vld [vmem:[#allocation5 + $0x90] sm:$0xff]
    %v220 = vld [vmem:[#allocation5 + $0x98] sm:$0xff]
    %v221 = vld [vmem:[#allocation5 + $0xa0] sm:$0xff]
    %v222 = vld [vmem:[#allocation5 + $0xa8] sm:$0xff]
    %v223 = vld [vmem:[#allocation5 + $0xb0] sm:$0xff]
    %v224 = vld [vmem:[#allocation5 + $0xb8] sm:$0xff]
    %v225 = vld [vmem:[#allocation5 + $0xc0] sm:$0xff]
    %v226 = vld [vmem:[#allocation5 + $0xc8] sm:$0xff]
    %v227 = vld [vmem:[#allocation5 + $0xd0] sm:$0xff]
    %v228 = vld [vmem:[#allocation5 + $0xd8] sm:$0xff]
    %v229 = vld [vmem:[#allocation5 + $0xe0] sm:$0xff]
    %v230 = vld [vmem:[#allocation5 + $0xe8] sm:$0xff]
    %v231 = vld [vmem:[#allocation5 + $0xf0] sm:$0xff]
    %v232 = vld [vmem:[#allocation5 + $0xf8] sm:$0xff]
    %v233 = vld [vmem:[%s6] sm:$0x3]
    %v235 = vlaneseq
    %v236 = vshrl.u32 %v235, 7
    %v237 = vsub.s32 0, %v236
    %v238 = vrot.slane %v233, %v237
    %v239 = vlaneseq
    %v240 = vshrl.u32 %v239, 7
    %v241 = vsub.s32 1, %v240
    %v242 = vrot.slane %v233, %v241
    %v277 = vunpack.c.l.b16 %v201
    %v278 = vunpack.c.h.b16 %v201
    %v279 = vunpack.c.l.b16 %v202
    %v280 = vunpack.c.h.b16 %v202
    %v281 = vunpack.c.l.b16 %v203
    %v282 = vunpack.c.h.b16 %v203
    %v283 = vunpack.c.l.b16 %v204
    %v284 = vunpack.c.h.b16 %v204
    %v285 = vunpack.c.l.b16 %v205
    %v286 = vunpack.c.h.b16 %v205
    %v287 = vunpack.c.l.b16 %v206
    %v288 = vunpack.c.h.b16 %v206
    %v289 = vunpack.c.l.b16 %v207
    %v290 = vunpack.c.h.b16 %v207
    %v291 = vunpack.c.l.b16 %v208
    %v292 = vunpack.c.h.b16 %v208
    %v293 = vunpack.c.l.b16 %v209
    %v294 = vunpack.c.h.b16 %v209
    %v295 = vunpack.c.l.b16 %v210
    %v296 = vunpack.c.h.b16 %v210
    %v297 = vunpack.c.l.b16 %v211
    %v298 = vunpack.c.h.b16 %v211
    %v299 = vunpack.c.l.b16 %v212
    %v300 = vunpack.c.h.b16 %v212
    %v301 = vunpack.c.l.b16 %v213
    %v302 = vunpack.c.h.b16 %v213
    %v303 = vunpack.c.l.b16 %v214
    %v304 = vunpack.c.h.b16 %v214
    %v305 = vunpack.c.l.b16 %v215
    %v306 = vunpack.c.h.b16 %v215
    %v307 = vunpack.c.l.b16 %v216
    %v308 = vunpack.c.h.b16 %v216
    %v309 = vunpack.c.l.b16 %v217
    %v310 = vunpack.c.h.b16 %v217
    %v311 = vunpack.c.l.b16 %v218
    %v312 = vunpack.c.h.b16 %v218
    %v313 = vunpack.c.l.b16 %v219
    %v314 = vunpack.c.h.b16 %v219
    %v315 = vunpack.c.l.b16 %v220
    %v316 = vunpack.c.h.b16 %v220
    %v317 = vunpack.c.l.b16 %v221
    %v318 = vunpack.c.h.b16 %v221
    %v319 = vunpack.c.l.b16 %v222
    %v320 = vunpack.c.h.b16 %v222
    %v321 = vunpack.c.l.b16 %v223
    %v322 = vunpack.c.h.b16 %v223
    %v323 = vunpack.c.l.b16 %v224
    %v324 = vunpack.c.h.b16 %v224
    %v325 = vunpack.c.l.b16 %v225
    %v326 = vunpack.c.h.b16 %v225
    %v327 = vunpack.c.l.b16 %v226
    %v328 = vunpack.c.h.b16 %v226
    %v329 = vunpack.c.l.b16 %v227
    %v330 = vunpack.c.h.b16 %v227
    %v331 = vunpack.c.l.b16 %v228
    %v332 = vunpack.c.h.b16 %v228
    %v333 = vunpack.c.l.b16 %v229
    %v334 = vunpack.c.h.b16 %v229
    %v335 = vunpack.c.l.b16 %v230
    %v336 = vunpack.c.h.b16 %v230
    %v337 = vunpack.c.l.b16 %v231
    %v338 = vunpack.c.h.b16 %v231
    %v339 = vunpack.c.l.b16 %v232
    %v340 = vunpack.c.h.b16 %v232
    %v341 = vpack.c.b16 %v279, %v277
    %v342 = vpack.c.b16 %v280, %v278
    %v343 = vpack.c.b16 %v283, %v281
    %v344 = vpack.c.b16 %v284, %v282
    %v345 = vpack.c.b16 %v287, %v285
    %v346 = vpack.c.b16 %v288, %v286
    %v347 = vpack.c.b16 %v291, %v289
    %v348 = vpack.c.b16 %v292, %v290
    %v349 = vpack.c.b16 %v295, %v293
    %v350 = vpack.c.b16 %v296, %v294
    %v351 = vpack.c.b16 %v299, %v297
    %v352 = vpack.c.b16 %v300, %v298
    %v353 = vpack.c.b16 %v303, %v301
    %v354 = vpack.c.b16 %v304, %v302
    %v355 = vpack.c.b16 %v307, %v305
    %v356 = vpack.c.b16 %v308, %v306
    %v357 = vpack.c.b16 %v311, %v309
    %v358 = vpack.c.b16 %v312, %v310
    %v359 = vpack.c.b16 %v315, %v313
    %v360 = vpack.c.b16 %v316, %v314
    %v361 = vpack.c.b16 %v319, %v317
    %v362 = vpack.c.b16 %v320, %v318
    %v363 = vpack.c.b16 %v323, %v321
    %v364 = vpack.c.b16 %v324, %v322
    %v365 = vpack.c.b16 %v327, %v325
    %v366 = vpack.c.b16 %v328, %v326
    %v367 = vpack.c.b16 %v331, %v329
    %v368 = vpack.c.b16 %v332, %v330
    %v369 = vpack.c.b16 %v335, %v333
    %v370 = vpack.c.b16 %v336, %v334
    %v371 = vpack.c.b16 %v339, %v337
    %v372 = vpack.c.b16 %v340, %v338
    %405 = vmatprep.subr.bf16.mxu0 %v356
    %406 = vmatpush1.bf16.msra.mxu0 %v355
    %407 = vmatprep.subr.bf16.mxu0 %v354
    %408 = vmatpush1.bf16.msra.mxu0 %v353
    %409 = vmatprep.subr.bf16.mxu0 %v352
    %410 = vmatpush1.bf16.msra.mxu0 %v351
    %411 = vmatprep.subr.bf16.mxu0 %v350
    %412 = vmatpush1.bf16.msra.mxu0 %v349
    %413 = vmatprep.subr.bf16.mxu0 %v348
    %414 = vmatpush1.bf16.msra.mxu0 %v347
    %415 = vmatprep.subr.bf16.mxu0 %v346
    %416 = vmatpush1.bf16.msra.mxu0 %v345
    %417 = vmatprep.subr.bf16.mxu0 %v344
    %418 = vmatpush1.bf16.msra.mxu0 %v343
    %419 = vmatprep.subr.bf16.mxu0 %v342
    %420 = vmatpush1.bf16.msra.mxu0 %v341
    %421 = vmatprep.subr.bf16.mxu0 %v372
    %422 = vmatpush2.bf16.msra.mxu0 %v371
    %423 = vmatprep.subr.bf16.mxu0 %v370
    %424 = vmatpush2.bf16.msra.mxu0 %v369
    %425 = vmatprep.subr.bf16.mxu0 %v368
    %426 = vmatpush2.bf16.msra.mxu0 %v367
    %427 = vmatprep.subr.bf16.mxu0 %v366
    %428 = vmatpush2.bf16.msra.mxu0 %v365
    %429 = vmatprep.subr.bf16.mxu0 %v364
    %430 = vmatpush2.bf16.msra.mxu0 %v363
    %431 = vmatprep.subr.bf16.mxu0 %v362
    %432 = vmatpush2.bf16.msra.mxu0 %v361
    %433 = vmatprep.subr.bf16.mxu0 %v360
    %434 = vmatpush2.bf16.msra.mxu0 %v359
    %435 = vmatprep.subr.bf16.mxu0 %v358
    %436 = vmatpush2.bf16.msra.mxu0 %v357
    %437 = vmatprep.mubr.bf16.mxu0 %v200
    %438 = vmatmul.mubr.bf16.gmra.mxu0 %v199
    %v439 = vpop.f32.mrf.mxu0
    %v440 = vadd.f32 %v238, %v439
    %v441 = vpop.f32.mrf.mxu0
    %v442 = vadd.f32 %v242, %v441
    %v443 = vpop.f32.mrf.mxu0
    %v444 = vpop.f32.mrf.mxu0
    %445 = vdwg.mxu0
    %v446 = vmax.f32 %v440, 0.0
    %v447 = vmax.f32 %v442, 0.0
    %v448 = vld [vmem:[%s7] sm:$0x3]
    %v450 = vlaneseq
    %v451 = vshrl.u32 %v450, 7
    %v452 = vsub.s32 0, %v451
    %v453 = vrot.slane %v448, %v452
    %v454 = vlaneseq
    %v455 = vshrl.u32 %v454, 7
    %v456 = vsub.s32 1, %v455
    %v457 = vrot.slane %v448, %v456
    %v460 = vmul.f32 %v446, %v453
    %v461 = vmul.f32 %v447, %v457
    %v462 = vadd.f32 %v460, %v461
    %463 = vadd.xlane.f32.xlu0 %v462
    %v464 = vpop.xlane.xlu0 %463
    %s465 = sld [smem:[#allocation2]]
    %v466 = vstv %s465
    %v467 = vadd.f32 %v464, %v466
    %vm468 = vcmask 7168
    %469 = vst.msk [vmem:[%s9] sm:$0xff] %vm468, %v467
    // Predicated region
    $region46: #{tpu_custom_call.1} parent=1 // pred_check
      _
    $region47: #{tpu_custom_call.1} parent=1 // pred_check_branch
      %471 = sbr.rel (0) target = $region49
    $region48: #{tpu_custom_call.1} parent=1 // pred_region
      _
    $region49: #{tpu_custom_call.1} parent=1 // pred_fallthru
      _
    // Predicated region
    $region50: #{tpu_custom_call.1} parent=1 // pred_check
      _
    $region51: #{tpu_custom_call.1} parent=1 // pred_check_branch
      %473 = sbr.rel (0) target = $region53
    $region52: #{tpu_custom_call.1} parent=1 // pred_region
      _
    $region53: #{tpu_custom_call.1} parent=1 // pred_fallthru
      _
    %474 = vsyncpa [#allocation4], 1
    %475 = vsyncpa [#allocation6], 1

</llo_original>
